<compile_context>
chip_gen: v7x
topology: tpu7x:2x2x1
jax: 0.10.0
libtpu: 0.0.40
codegen_flags: <defaults>
</compile_context>

<pallas_src>
import functools

import jax
import jax.numpy as jnp
from jax.experimental import pallas as pl
from jax.experimental.pallas import tpu as pltpu


TILE_M_MAX = 256              # max batch-tile rows
TILE_K_MAX = 2048             # max reduction chunk per grid step
LANE = 128                    # lane granule; class dim is padded to a multiple of this
SUB_BF16 = 16                 # bf16 sublane pack granule (batch rows rounded to this)
LOSS_SUB = 8                  # sublane rows of the per-m-tile loss-partial block
W_RESIDENT_BYTES = 8 << 20    # keep the full W block VMEM-resident if it fits this


def _round_up(x, m):
    return (x + m - 1) // m * m


# ----------------------------------------------------------------------------
# fused forward + MSE kernel (hot path)
# ----------------------------------------------------------------------------
def _fwd_loss_kernel(x_ref, w_ref, b_ref, lab_ref, out_ref, loss_ref, acc_ref,
                     *, valid_b, valid_n, tile_m, tile_k, num_k, w_resident):
    """grid = (num_m, num_k); k is the reduction ("arbitrary") axis.

      x_ref    (tile_m, tile_k)            input dtype (cast to bf16 in-kernel)
      w_ref    (k_pad, n_pad) or (tile_k, n_pad)  bf16 (resident or k-streamed)
      b_ref    (1, n_pad)                  f32
      lab_ref  (tile_m, 1)                 int32
      out_ref  (tile_m, n_pad)             bf16 logits (lane-dense, padded)
      loss_ref (LOSS_SUB, LANE)            f32 per-m-tile sum of squared errors (bcast)
      acc_ref  (tile_m, n_pad)             f32 VMEM accumulator scratch
    """
    # program_id / num_programs must stay at the kernel's top level (not inside pl.when
    # bodies) -- nested cond branches have no interpret-mode lowering for them.
    m = pl.program_id(0)
    k = pl.program_id(1)

    @pl.when(k == 0)
    def _():
        # fold the bias into the accumulator init (no finalize-time add).
        acc_ref[...] = jnp.zeros_like(acc_ref) + b_ref[...]

    # cast x to bf16 in-kernel: the VPU cast hides under the MXU/DMA and removes the
    # wrapper-side pad+cast HBM pass over the dominant operand.
    x_bf = x_ref[...].astype(jnp.bfloat16)
    if w_resident:
        if num_k == 1:
            w_tile = w_ref[...]
        else:
            w_tile = w_ref[pl.ds(k * tile_k, tile_k), :]
    else:
        w_tile = w_ref[...]
    acc_ref[...] += jnp.dot(x_bf, w_tile, preferred_element_type=jnp.float32)

    @pl.when(k == num_k - 1)
    def _():
        logits = acc_ref[...]                       # f32
        out_ref[...] = logits.astype(out_ref.dtype)

        # fused MSE partial: one-hot built in-kernel from integer labels; zero-padded
        # rows (>= valid_b) and lanes (>= valid_n) are masked out of the sum.
        row_ids = m * tile_m + jax.lax.broadcasted_iota(jnp.int32, logits.shape, 0)
        col_ids = jax.lax.broadcasted_iota(jnp.int32, logits.shape, 1)
        valid = (row_ids < valid_b) & (col_ids < valid_n)
        onehot = (col_ids == lab_ref[...]).astype(jnp.float32)
        diff = jnp.where(valid, logits - onehot, 0.0)
        partial = jnp.sum(diff * diff)
        # broadcast the scalar into a lane-dense block; wrapper sums and renormalizes.
        loss_ref[...] = jnp.zeros_like(loss_ref) + partial


def _fused_call(x2d, w, b, labels):
    B, K = x2d.shape
    N = w.shape[1]

    # adaptive batch tile: no 128-row DMA / MXU work for tiny batches.
    tile_m = min(_round_up(B, SUB_BF16), TILE_M_MAX)
    m_pad = _round_up(B, tile_m)
    num_m = m_pad // tile_m

    # big reduction chunks: fewer grid steps amortize the ~0.35 us/step overhead.
    tile_k = min(_round_up(K, 512), TILE_K_MAX)
    k_pad = _round_up(K, tile_k)
    num_k = k_pad // tile_k

    n_pad = _round_up(N, LANE)

    # x stays in its input dtype (bf16 cast happens in-kernel); pad only if needed.
    if (B, K) == (m_pad, k_pad):
        x_p = x2d
    else:
        x_p = jnp.zeros((m_pad, k_pad), x2d.dtype).at[:B, :K].set(x2d)

    w_p = jnp.zeros((k_pad, n_pad), jnp.bfloat16).at[:K, :N].set(w.astype(jnp.bfloat16))
    b_p = jnp.zeros((1, n_pad), jnp.float32).at[0, :N].set(b.astype(jnp.float32))
    lab_p = jnp.zeros((m_pad, 1), jnp.int32).at[:B, 0].set(labels.astype(jnp.int32))

    # W VMEM-resident when it fits: constant block index -> one DMA for the whole grid
    # instead of a re-stream per batch tile.  Budgeted well under v7x's 64 MiB VMEM.
    w_resident = (k_pad * n_pad * 2) <= W_RESIDENT_BYTES
    if w_resident:
        w_spec = pl.BlockSpec((k_pad, n_pad), lambda mm, kk: (0, 0))
    else:
        w_spec = pl.BlockSpec((tile_k, n_pad), lambda mm, kk: (kk, 0))

    kernel = functools.partial(
        _fwd_loss_kernel, valid_b=B, valid_n=N, tile_m=tile_m, tile_k=tile_k,
        num_k=num_k, w_resident=w_resident)

    logits_pad, loss_partials = pl.pallas_call(
        kernel,
        out_shape=(
            # bf16 logits halve store traffic; the f32 accumulator stays in VMEM and the
            # fused MSE is computed from it, so loss accuracy is unchanged.
            jax.ShapeDtypeStruct((m_pad, n_pad), jnp.bfloat16),
            jax.ShapeDtypeStruct((num_m * LOSS_SUB, LANE), jnp.float32),
        ),
        grid_spec=pltpu.PrefetchScalarGridSpec(
            num_scalar_prefetch=0,
            grid=(num_m, num_k),
            in_specs=[
                pl.BlockSpec((tile_m, tile_k), lambda mm, kk: (mm, kk)),   # x tile
                w_spec,                                                    # W
                pl.BlockSpec((1, n_pad), lambda mm, kk: (0, 0)),           # bias
                pl.BlockSpec((tile_m, 1), lambda mm, kk: (mm, 0)),         # int labels
            ],
            out_specs=[
                pl.BlockSpec((tile_m, n_pad), lambda mm, kk: (mm, 0)),     # logits
                pl.BlockSpec((LOSS_SUB, LANE), lambda mm, kk: (mm, 0)),    # loss partials
            ],
            scratch_shapes=[pltpu.VMEM((tile_m, n_pad), jnp.float32)],
        ),
        compiler_params=pltpu.CompilerParams(
            # batch tiles parallel (megacore), K reduction arbitrary.
            dimension_semantics=("parallel", "arbitrary"),
            # worst case (tile_m=256, tile_k=2048, resident W <=8 MiB) is ~13 MiB;
            # 32 MiB is safe on v5e/v6e (128 MiB physical) and v7x (64 MiB physical).
            vmem_limit_bytes=32 * 1024 * 1024,
        ),
    )(x_p, w_p, b_p, lab_p)

    logits = logits_pad[:B, :N]
    sq_err = jnp.sum(loss_partials) / (LOSS_SUB * LANE)
    return logits, sq_err / (B * N)


# ----------------------------------------------------------------------------
# interface methods
# ----------------------------------------------------------------------------
@jax.jit
def forward_and_loss(x_nchw, w, b, labels):
    """Optimized training path: forward + MSE in one pallas_call (no HBM round-trip)."""
    x2d = x_nchw.reshape(x_nchw.shape[0], -1)   # row-major flatten == torch .flatten(1)
    logits, mse = _fused_call(x2d, w, b, labels)
    return logits, {"mse": mse}


@jax.jit
def forward(x_nchw, w, b):
    """Interface forward(): logits only (reuses the fused kernel; loss output discarded —
    the extra VPU work is hidden under the MXU/DMA)."""
    B = x_nchw.shape[0]
    x2d = x_nchw.reshape(B, -1)
    logits, _ = _fused_call(x2d, w, b, jnp.zeros((B,), jnp.int32))
    return logits


# ----------------------------------------------------------------------------
# standalone loss() on precomputed forward() outputs (interface method)
# ----------------------------------------------------------------------------
def _mse_kernel(out_ref, lab_ref, loss_ref, *, valid_b, valid_n, tile_b, num_m):
    m = pl.program_id(0)   # top-level only (see compile-fix note above)

    @pl.when(m == 0)
    def _():
        loss_ref[...] = jnp.zeros_like(loss_ref)

    logits = out_ref[...]
    row_ids = m * tile_b + jax.lax.broadcasted_iota(jnp.int32, logits.shape, 0)
    col_ids = jax.lax.broadcasted_iota(jnp.int32, logits.shape, 1)
    valid = (row_ids < valid_b) & (col_ids < valid_n)
    onehot = (col_ids == lab_ref[...]).astype(jnp.float32)
    diff = jnp.where(valid, logits - onehot, 0.0)
    loss_ref[...] += jnp.sum(diff * diff)

    @pl.when(m == num_m - 1)
    def _():
        loss_ref[...] = loss_ref[...] / (valid_b * valid_n)


@jax.jit
def loss(outputs, labels):
    """MSE vs one-hot targets.  Integer labels in, one-hot built in-kernel (never
    materialized / DMA'd); batch is tiled in large (tile_b, n_pad) blocks and the
    lane-dense (8,128) output block acts as the accumulator."""
    B, N = outputs.shape
    tile_b = min(_round_up(B, 8), 256)      # big tiles: few grid steps, ~128 KiB each
    m_pad = _round_up(B, tile_b)
    num_m = m_pad // tile_b
    n_pad = _round_up(N, LANE)
    out_p = jnp.zeros((m_pad, n_pad), jnp.float32).at[:B, :N].set(outputs.astype(jnp.float32))
    lab_p = jnp.zeros((m_pad, 1), jnp.int32).at[:B, 0].set(labels.astype(jnp.int32))

    l = pl.pallas_call(
        functools.partial(_mse_kernel, valid_b=B, valid_n=N, tile_b=tile_b, num_m=num_m),
        out_shape=jax.ShapeDtypeStruct((LOSS_SUB, LANE), jnp.float32),
        grid_spec=pltpu.PrefetchScalarGridSpec(
            num_scalar_prefetch=0,
            grid=(num_m,),
            in_specs=[
                pl.BlockSpec((tile_b, n_pad), lambda mm: (mm, 0)),
                pl.BlockSpec((tile_b, 1), lambda mm: (mm, 0)),
            ],
            out_specs=pl.BlockSpec((LOSS_SUB, LANE), lambda mm: (0, 0)),
        ),
        compiler_params=pltpu.CompilerParams(dimension_semantics=("arbitrary",)),
    )(out_p, lab_p)
    return {"mse": l[0, 0]}


# ----------------------------------------------------------------------------
# postprocess(): raw logits -> predicted class labels (plain-JAX glue)
# ----------------------------------------------------------------------------
@jax.jit
def postprocess(outputs):
    # TODO(synk): tiny cross-lane argmax over 10 classes; not worth a dedicated kernel.
    return jnp.argmax(outputs, axis=-1)


if __name__ == "__main__":
    key = jax.random.PRNGKey(0)
    kx, kw, kb, kt = jax.random.split(key, 4)

    B, C, H, W = 2, 4, 16, 16          # small NCHW input
    N_CLASSES = 10
    K = C * H * W                      # 1024

    x = jax.random.normal(kx, (B, C, H, W), dtype=jnp.float32)
    w = jax.random.normal(kw, (K, N_CLASSES), dtype=jnp.float32) * 0.02
    b = jax.random.normal(kb, (N_CLASSES,), dtype=jnp.float32) * 0.02
    labels = jax.random.randint(kt, (B,), 0, N_CLASSES)

    # fused forward + loss (optimized path)
    logits, losses = forward_and_loss(x, w, b, labels)
    logits = jax.block_until_ready(logits)
    mse = jax.block_until_ready(losses["mse"])

    # reference with the same bf16-operand / f32-accumulate math as the kernel
    x2d = x.reshape(B, K)
    ref_logits = (x2d.astype(jnp.bfloat16).astype(jnp.float32)
                  @ w.astype(jnp.bfloat16).astype(jnp.float32)) + b
    assert jnp.allclose(logits.astype(jnp.float32), ref_logits,
                        atol=1e-2, rtol=1e-2), "forward mismatch"

    onehot = jax.nn.one_hot(labels, N_CLASSES, dtype=jnp.float32)
    ref_mse = jnp.mean((ref_logits - onehot) ** 2)   # kernel MSE uses the f32 accumulator
    assert jnp.allclose(mse, ref_mse, atol=1e-4, rtol=1e-3), "fused loss mismatch"

    # interface methods
    out_fwd = jax.block_until_ready(forward(x, w, b))
    assert jnp.allclose(out_fwd.astype(jnp.float32), logits.astype(jnp.float32),
                        atol=1e-6, rtol=1e-6), "forward() mismatch"

    losses2 = loss(out_fwd, labels)
    l2 = jax.block_until_ready(losses2["mse"])
    ref_mse2 = jnp.mean((out_fwd.astype(jnp.float32) - onehot) ** 2)
    assert jnp.allclose(l2, ref_mse2, atol=1e-5, rtol=1e-4), "loss() mismatch"

    preds = jax.block_until_ready(postprocess(out_fwd))
    assert preds.shape == (B,)

    print("KERNEL_OK")
</pallas_src>

<mosaic_0001>
module attributes {stable_mosaic.version = 11 : i64} {
  func.func @_fwd_loss_kernel(%arg0: i32, %arg1: i32, %arg2: memref<16x1024xf32, #tpu.memory_space<vmem>>, %arg3: memref<1024x128xbf16, #tpu.memory_space<vmem>>, %arg4: memref<1x128xf32, #tpu.memory_space<vmem>>, %arg5: memref<16x1xi32, #tpu.memory_space<vmem>>, %arg6: memref<16x128xbf16, #tpu.memory_space<vmem>>, %arg7: memref<8x128xf32, #tpu.memory_space<vmem>>, %arg8: memref<16x128xf32, #tpu.memory_space<vmem>>) attributes {dimension_semantics = [#tpu.dimension_semantics<parallel>, #tpu.dimension_semantics<arbitrary>], iteration_bounds = array<i64: 1, 1>, scalar_prefetch = 0 : i64, scratch_operands = 1 : i64, tpu.core_type = #tpu.core_type<tc>, window_params = [{transform_indices = @transform_0, window_bounds = array<i64: 16, 1024>}, {pipeline_mode = #tpu.pipeline_mode<synchronous>, transform_indices = @transform_1, window_bounds = array<i64: 1024, 128>}, {pipeline_mode = #tpu.pipeline_mode<synchronous>, transform_indices = @transform_2, window_bounds = array<i64: 1, 128>}, {transform_indices = @transform_3, window_bounds = array<i64: 16, 1>}, {transform_indices = @transform_4, window_bounds = array<i64: 16, 128>}, {transform_indices = @transform_5, window_bounds = array<i64: 8, 128>}]} {
    %c0_i32 = arith.constant 0 : i32
    %0 = arith.cmpi eq, %arg1, %c0_i32 : i32
    %1 = arith.extui %0 : i1 to i32
    %c0_i32_0 = arith.constant 0 : i32
    %2 = arith.cmpi ne, %1, %c0_i32_0 : i32
    scf.if %2 {
      %cst_10 = arith.constant 0.000000e+00 : f32
      %13 = vector.broadcast %cst_10 : f32 to vector<16x128xf32>
      %c0_11 = arith.constant 0 : index
      %c0_12 = arith.constant 0 : index
      %14 = vector.load %arg4[%c0_11, %c0_12] : memref<1x128xf32, #tpu.memory_space<vmem>>, vector<1x128xf32>
      %15 = vector.broadcast %14 : vector<1x128xf32> to vector<16x128xf32>
      %16 = arith.addf %13, %15 : vector<16x128xf32>
      %c0_13 = arith.constant 0 : index
      %c0_14 = arith.constant 0 : index
      %17 = vector.load %arg8[%c0_13, %c0_14] : memref<16x128xf32, #tpu.memory_space<vmem>>, vector<16x128xf32>
      tpu.vector_store %arg8[%c0_13, %c0_14], %16 {strides = array<i32>} : memref<16x128xf32, #tpu.memory_space<vmem>>, vector<16x128xf32>,
    } else {
    }
    %c0 = arith.constant 0 : index
    %c0_1 = arith.constant 0 : index
    %3 = vector.load %arg2[%c0, %c0_1] : memref<16x1024xf32, #tpu.memory_space<vmem>>, vector<16x1024xf32>
    %4 = arith.truncf %3 : vector<16x1024xf32> to vector<16x1024xbf16>
    %c0_2 = arith.constant 0 : index
    %c0_3 = arith.constant 0 : index
    %5 = vector.load %arg3[%c0_2, %c0_3] : memref<1024x128xbf16, #tpu.memory_space<vmem>>, vector<1024x128xbf16>
    %c0_4 = arith.constant 0 : index
    %c0_5 = arith.constant 0 : index
    %6 = vector.load %arg8[%c0_4, %c0_5] : memref<16x128xf32, #tpu.memory_space<vmem>>, vector<16x128xf32>
    %cst = arith.constant dense<0.000000e+00> : vector<16x128xf32>
    %7 = tpu.matmul %4, %5, %cst {dimension_numbers = #tpu.dot_dimension_numbers<[1], [0], [0], [1], [0, 0, 1, 1], [], []>} : vector<16x1024xbf16>, vector<1024x128xbf16>, vector<16x128xf32> -> vector<16x128xf32>
    %8 = arith.addf %6, %7 : vector<16x128xf32>
    %c0_6 = arith.constant 0 : index
    %c0_7 = arith.constant 0 : index
    %9 = vector.load %arg8[%c0_6, %c0_7] : memref<16x128xf32, #tpu.memory_space<vmem>>, vector<16x128xf32>
    tpu.vector_store %arg8[%c0_6, %c0_7], %8 {strides = array<i32>} : memref<16x128xf32, #tpu.memory_space<vmem>>, vector<16x128xf32>,
    %c0_i32_8 = arith.constant 0 : i32
    %10 = arith.cmpi eq, %arg1, %c0_i32_8 : i32
    %11 = arith.extui %10 : i1 to i32
    %c0_i32_9 = arith.constant 0 : i32
    %12 = arith.cmpi ne, %11, %c0_i32_9 : i32
    scf.if %12 {
      %c0_10 = arith.constant 0 : index
      %c0_11 = arith.constant 0 : index
      %13 = vector.load %arg8[%c0_10, %c0_11] : memref<16x128xf32, #tpu.memory_space<vmem>>, vector<16x128xf32>
      %14 = arith.truncf %13 : vector<16x128xf32> to vector<16x128xbf16>
      %c0_12 = arith.constant 0 : index
      %c0_13 = arith.constant 0 : index
      %15 = vector.load %arg6[%c0_12, %c0_13] : memref<16x128xbf16, #tpu.memory_space<vmem>>, vector<16x128xbf16>
      tpu.vector_store %arg6[%c0_12, %c0_13], %14 {strides = array<i32>} : memref<16x128xbf16, #tpu.memory_space<vmem>>, vector<16x128xbf16>,
      %c16_i32 = arith.constant 16 : i32
      %16 = arith.muli %arg0, %c16_i32 : i32
      %17 = tpu.iota {dimensions = array<i32: 0>} : vector<16x128xi32>
      %18 = vector.broadcast %16 : i32 to vector<16x128xi32>
      %19 = arith.addi %18, %17 : vector<16x128xi32>
      %20 = tpu.iota {dimensions = array<i32: 1>} : vector<16x128xi32>
      %c2_i32 = arith.constant 2 : i32
      %21 = vector.broadcast %c2_i32 : i32 to vector<16x128xi32>
      %22 = arith.cmpi slt, %19, %21 : vector<16x128xi32>
      %c10_i32 = arith.constant 10 : i32
      %23 = vector.broadcast %c10_i32 : i32 to vector<16x128xi32>
      %24 = arith.cmpi slt, %20, %23 : vector<16x128xi32>
      %25 = arith.andi %22, %24 : vector<16x128xi1>
      %c0_14 = arith.constant 0 : index
      %c0_15 = arith.constant 0 : index
      %26 = vector.load %arg5[%c0_14, %c0_15] : memref<16x1xi32, #tpu.memory_space<vmem>>, vector<16x1xi32>
      %27 = vector.broadcast %26 : vector<16x1xi32> to vector<16x128xi32>
      %28 = arith.cmpi eq, %20, %27 : vector<16x128xi32>
      %29 = arith.extui %28 : vector<16x128xi1> to vector<16x128xi32>
      %30 = arith.sitofp %29 : vector<16x128xi32> to vector<16x128xf32>
      %31 = arith.subf %13, %30 : vector<16x128xf32>
      %cst_16 = arith.constant 0.000000e+00 : f32
      %32 = vector.broadcast %cst_16 : f32 to vector<16x128xf32>
      %33 = arith.select %25, %31, %32 : vector<16x128xi1>, vector<16x128xf32>
      %34 = arith.mulf %33, %33 : vector<16x128xf32>
      %35 = vector.shape_cast %34 : vector<16x128xf32> to vector<1x16x128xf32>
      %cst_17 = arith.constant dense<0.000000e+00> : vector<1xf32>
      %36 = vector.multi_reduction <add>, %35, %cst_17 [1, 2] : vector<1x16x128xf32> to vector<1xf32>
      %37 = vector.shape_cast %36 : vector<1xf32> to vector<1x1x1xf32>
      %38 = vector.extract %37[0, 0, 0] : f32 from vector<1x1x1xf32>
      %cst_18 = arith.constant 0.000000e+00 : f32
      %39 = vector.broadcast %cst_18 : f32 to vector<8x128xf32>
      %40 = vector.broadcast %38 : f32 to vector<8x128xf32>
      %41 = arith.addf %39, %40 : vector<8x128xf32>
      %c0_19 = arith.constant 0 : index
      %c0_20 = arith.constant 0 : index
      %42 = vector.load %arg7[%c0_19, %c0_20] : memref<8x128xf32, #tpu.memory_space<vmem>>, vector<8x128xf32>
      tpu.vector_store %arg7[%c0_19, %c0_20], %41 {strides = array<i32>} : memref<8x128xf32, #tpu.memory_space<vmem>>, vector<8x128xf32>,
    } else {
    }
    return
  }
  func.func @transform_0(%arg0: i32, %arg1: i32) -> (i32, i32) {
    %c0_i32 = arith.constant 0 : i32
    return %arg0, %arg1 : i32, i32
  }
  func.func @transform_1(%arg0: i32, %arg1: i32) -> (i32, i32) {
    %c0_i32 = arith.constant 0 : i32
    %c0_i32_0 = arith.constant 0 : i32
    %c0_i32_1 = arith.constant 0 : i32
    return %c0_i32, %c0_i32_0 : i32, i32
  }
  func.func @transform_2(%arg0: i32, %arg1: i32) -> (i32, i32) {
    %c0_i32 = arith.constant 0 : i32
    %c0_i32_0 = arith.constant 0 : i32
    %c0_i32_1 = arith.constant 0 : i32
    return %c0_i32, %c0_i32_0 : i32, i32
  }
  func.func @transform_3(%arg0: i32, %arg1: i32) -> (i32, i32) {
    %c0_i32 = arith.constant 0 : i32
    %c0_i32_0 = arith.constant 0 : i32
    return %arg0, %c0_i32 : i32, i32
  }
  func.func @transform_4(%arg0: i32, %arg1: i32) -> (i32, i32) {
    %c0_i32 = arith.constant 0 : i32
    %c0_i32_0 = arith.constant 0 : i32
    return %arg0, %c0_i32 : i32, i32
  }
  func.func @transform_5(%arg0: i32, %arg1: i32) -> (i32, i32) {
    %c0_i32 = arith.constant 0 : i32
    %c0_i32_0 = arith.constant 0 : i32
    return %arg0, %c0_i32 : i32, i32
  }
}

</mosaic_0001>

<llo_original>
// kernel: forward_and_loss.1
$region0: #{forward_and_loss.1}
  #allocation0 [shape = 'u32[]', space=smem, size = 0x4, offset = 0x4, fixed_abs, tag = 'smem constant byte address 0x4 - core index']
  #allocation1 [shape = 'u32[144,128]{1,0:T(1,128)}', space=vmem, size = 0x12000, scoped, tag = 'internal scratch']
  #allocation2 [shape = 'f32[16,128]{1,0:T(8,128)}', space=vmem, size = 0x2000, scoped, tag = 'scratch operand']
  %s0 = inlined_call_operand.vmem [shape: f32[16,1024], index: 0, kind: input, shape index: {}]
  %s1 = inlined_call_operand.vmem [shape: bf16[1024,128], index: 1, kind: input, shape index: {}]
  %s2 = inlined_call_operand.vmem [shape: f32[1,128], index: 2, kind: input, shape index: {}]
  %s3 = inlined_call_operand.vmem [shape: s32[16,1], index: 3, kind: input, shape index: {}]
  %s4 = inlined_call_operand.vmem [shape: bf16[16,128], index: 4, kind: output, shape index: {0}]
  %s5 = inlined_call_operand.vmem [shape: f32[8,128], index: 5, kind: output, shape index: {1}]
  %6 = xla_tuple %s4, %s5
  %s7 = sld [smem:[#allocation0]]
  $region42: #{forward_and_loss.1} parent=0
    _
  %s9 = ssub.s32 1, %s7
  %s10 = scalar_select 0, %s9, %s7
  // Predicated region
  $region2: #{forward_and_loss.1} parent=0 // pred_check
    _
  $region3: #{forward_and_loss.1} parent=0 // pred_check_branch
    %12 = sbr.rel (0) target = $region5
  $region4: #{forward_and_loss.1} parent=0 // pred_region
    _
  $region5: #{forward_and_loss.1} parent=0 // pred_fallthru
    _
  // Predicated region
  $region6: #{forward_and_loss.1} parent=0 // pred_check
    _
  $region7: #{forward_and_loss.1} parent=0 // pred_check_branch
    %14 = sbr.rel (0) target = $region9
  $region8: #{forward_and_loss.1} parent=0 // pred_region
    _
  $region9: #{forward_and_loss.1} parent=0 // pred_fallthru
    _
  // Predicated region
  $region10: #{forward_and_loss.1} parent=0 // pred_check
    _
  $region11: #{forward_and_loss.1} parent=0 // pred_check_branch
    %16 = sbr.rel (0) target = $region13
  $region12: #{forward_and_loss.1} parent=0 // pred_region
    _
  $region13: #{forward_and_loss.1} parent=0 // pred_fallthru
    _
  // Predicated region
  $region14: #{forward_and_loss.1} parent=0 // pred_check
    _
  $region15: #{forward_and_loss.1} parent=0 // pred_check_branch
    %18 = sbr.rel (0) target = $region17
  $region16: #{forward_and_loss.1} parent=0 // pred_region
    _
  $region17: #{forward_and_loss.1} parent=0 // pred_fallthru
    _
  %p20 = scmp.eq.s32.totalorder 0, 0
  // Predicated region
  $region18: #{forward_and_loss.1} parent=0 // pred_check
    %p21 = pneg %p20
  $region19: #{forward_and_loss.1} parent=0 // pred_check_branch
    %23 = sbr.rel (%p21) target = $region21
  $region20: #{forward_and_loss.1} parent=0 // pred_region
    %v24 = vld [vmem:[%s2] sm:$0x1]
    %v26 = vlaneseq
    %v27 = vshrl.u32 %v26, 7
    %v28 = vsub.s32 0, %v27
    %v29 = vrot.slane %v24, %v28
    %v31 = vadd.f32 %v29, 0.0
    %32 = vst [vmem:[#allocation2] sm:$0xff] %v31
    %33 = vst [vmem:[#allocation2 + $0x8] sm:$0xff] %v31
  $region21: #{forward_and_loss.1} parent=0 // pred_fallthru
    _
  %v34 = vld [vmem:[%s0] sm:$0xff]
  %v35 = vld [vmem:[%s0 + $0x8] sm:$0xff]
  %v36 = vld [vmem:[%s0 + $0x10] sm:$0xff]
  %v37 = vld [vmem:[%s0 + $0x18] sm:$0xff]
  %v38 = vld [vmem:[%s0 + $0x20] sm:$0xff]
  %v39 = vld [vmem:[%s0 + $0x28] sm:$0xff]
  %v40 = vld [vmem:[%s0 + $0x30] sm:$0xff]
  %v41 = vld [vmem:[%s0 + $0x38] sm:$0xff]
  %v42 = vld [vmem:[%s0 + $0x40] sm:$0xff]
  %v43 = vld [vmem:[%s0 + $0x48] sm:$0xff]
  %v44 = vld [vmem:[%s0 + $0x50] sm:$0xff]
  %v45 = vld [vmem:[%s0 + $0x58] sm:$0xff]
  %v46 = vld [vmem:[%s0 + $0x60] sm:$0xff]
  %v47 = vld [vmem:[%s0 + $0x68] sm:$0xff]
  %v48 = vld [vmem:[%s0 + $0x70] sm:$0xff]
  %v49 = vld [vmem:[%s0 + $0x78] sm:$0xff]
  %v50 = vpack.c.bf16 %v42, %v34
  %v51 = vpack.c.bf16 %v43, %v35
  %v52 = vpack.c.bf16 %v44, %v36
  %v53 = vpack.c.bf16 %v45, %v37
  %v54 = vpack.c.bf16 %v46, %v38
  %v55 = vpack.c.bf16 %v47, %v39
  %v56 = vpack.c.bf16 %v48, %v40
  %v57 = vpack.c.bf16 %v49, %v41
  %v58 = vld [vmem:[%s1] sm:$0xf]
  %v59 = vld [vmem:[%s1 + $0x4] sm:$0xf]
  %v60 = vld [vmem:[%s1 + $0x8] sm:$0xf]
  %v61 = vld [vmem:[%s1 + $0xc] sm:$0xf]
  %v62 = vld [vmem:[%s1 + $0x10] sm:$0xf]
  %v63 = vld [vmem:[%s1 + $0x14] sm:$0xf]
  %v64 = vld [vmem:[%s1 + $0x18] sm:$0xf]
  %v65 = vld [vmem:[%s1 + $0x1c] sm:$0xf]
  %v66 = vld [vmem:[%s1 + $0x20] sm:$0xf]
  %v67 = vld [vmem:[%s1 + $0x24] sm:$0xf]
  %v68 = vld [vmem:[%s1 + $0x28] sm:$0xf]
  %v69 = vld [vmem:[%s1 + $0x2c] sm:$0xf]
  %v70 = vld [vmem:[%s1 + $0x30] sm:$0xf]
  %v71 = vld [vmem:[%s1 + $0x34] sm:$0xf]
  %v72 = vld [vmem:[%s1 + $0x38] sm:$0xf]
  %v73 = vld [vmem:[%s1 + $0x3c] sm:$0xf]
  %v74 = vld [vmem:[%s1 + $0x40] sm:$0xf]
  %v75 = vld [vmem:[%s1 + $0x44] sm:$0xf]
  %v76 = vld [vmem:[%s1 + $0x48] sm:$0xf]
  %v77 = vld [vmem:[%s1 + $0x4c] sm:$0xf]
  %v78 = vld [vmem:[%s1 + $0x50] sm:$0xf]
  %v79 = vld [vmem:[%s1 + $0x54] sm:$0xf]
  %v80 = vld [vmem:[%s1 + $0x58] sm:$0xf]
  %v81 = vld [vmem:[%s1 + $0x5c] sm:$0xf]
  %v82 = vld [vmem:[%s1 + $0x60] sm:$0xf]
  %v83 = vld [vmem:[%s1 + $0x64] sm:$0xf]
  %v84 = vld [vmem:[%s1 + $0x68] sm:$0xf]
  %v85 = vld [vmem:[%s1 + $0x6c] sm:$0xf]
  %v86 = vld [vmem:[%s1 + $0x70] sm:$0xf]
  %v87 = vld [vmem:[%s1 + $0x74] sm:$0xf]
  %v88 = vld [vmem:[%s1 + $0x78] sm:$0xf]
  %v89 = vld [vmem:[%s1 + $0x7c] sm:$0xf]
  %v90 = vld [vmem:[%s1 + $0x80] sm:$0xf]
  %v91 = vld [vmem:[%s1 + $0x84] sm:$0xf]
  %v92 = vld [vmem:[%s1 + $0x88] sm:$0xf]
  %v93 = vld [vmem:[%s1 + $0x8c] sm:$0xf]
  %v94 = vld [vmem:[%s1 + $0x90] sm:$0xf]
  %v95 = vld [vmem:[%s1 + $0x94] sm:$0xf]
  %v96 = vld [vmem:[%s1 + $0x98] sm:$0xf]
  %v97 = vld [vmem:[%s1 + $0x9c] sm:$0xf]
  %v98 = vld [vmem:[%s1 + $0xa0] sm:$0xf]
  %v99 = vld [vmem:[%s1 + $0xa4] sm:$0xf]
  %v100 = vld [vmem:[%s1 + $0xa8] sm:$0xf]
  %v101 = vld [vmem:[%s1 + $0xac] sm:$0xf]
  %v102 = vld [vmem:[%s1 + $0xb0] sm:$0xf]
  %v103 = vld [vmem:[%s1 + $0xb4] sm:$0xf]
  %v104 = vld [vmem:[%s1 + $0xb8] sm:$0xf]
  %v105 = vld [vmem:[%s1 + $0xbc] sm:$0xf]
  %v106 = vld [vmem:[%s1 + $0xc0] sm:$0xf]
  %v107 = vld [vmem:[%s1 + $0xc4] sm:$0xf]
  %v108 = vld [vmem:[%s1 + $0xc8] sm:$0xf]
  %v109 = vld [vmem:[%s1 + $0xcc] sm:$0xf]
  %v110 = vld [vmem:[%s1 + $0xd0] sm:$0xf]
  %v111 = vld [vmem:[%s1 + $0xd4] sm:$0xf]
  %v112 = vld [vmem:[%s1 + $0xd8] sm:$0xf]
  %v113 = vld [vmem:[%s1 + $0xdc] sm:$0xf]
  %v114 = vld [vmem:[%s1 + $0xe0] sm:$0xf]
  %v115 = vld [vmem:[%s1 + $0xe4] sm:$0xf]
  %v116 = vld [vmem:[%s1 + $0xe8] sm:$0xf]
  %v117 = vld [vmem:[%s1 + $0xec] sm:$0xf]
  %v118 = vld [vmem:[%s1 + $0xf0] sm:$0xf]
  %v119 = vld [vmem:[%s1 + $0xf4] sm:$0xf]
  %v120 = vld [vmem:[%s1 + $0xf8] sm:$0xf]
  %v121 = vld [vmem:[%s1 + $0xfc] sm:$0xf]
  %v122 = vld [vmem:[%s1 + $0x100] sm:$0xf]
  %v123 = vld [vmem:[%s1 + $0x104] sm:$0xf]
  %v124 = vld [vmem:[%s1 + $0x108] sm:$0xf]
  %v125 = vld [vmem:[%s1 + $0x10c] sm:$0xf]
  %v126 = vld [vmem:[%s1 + $0x110] sm:$0xf]
  %v127 = vld [vmem:[%s1 + $0x114] sm:$0xf]
  %v128 = vld [vmem:[%s1 + $0x118] sm:$0xf]
  %v129 = vld [vmem:[%s1 + $0x11c] sm:$0xf]
  %v130 = vld [vmem:[%s1 + $0x120] sm:$0xf]
  %v131 = vld [vmem:[%s1 + $0x124] sm:$0xf]
  %v132 = vld [vmem:[%s1 + $0x128] sm:$0xf]
  %v133 = vld [vmem:[%s1 + $0x12c] sm:$0xf]
  %v134 = vld [vmem:[%s1 + $0x130] sm:$0xf]
  %v135 = vld [vmem:[%s1 + $0x134] sm:$0xf]
  %v136 = vld [vmem:[%s1 + $0x138] sm:$0xf]
  %v137 = vld [vmem:[%s1 + $0x13c] sm:$0xf]
  %v138 = vld [vmem:[%s1 + $0x140] sm:$0xf]
  %v139 = vld [vmem:[%s1 + $0x144] sm:$0xf]
  %v140 = vld [vmem:[%s1 + $0x148] sm:$0xf]
  %v141 = vld [vmem:[%s1 + $0x14c] sm:$0xf]
  %v142 = vld [vmem:[%s1 + $0x150] sm:$0xf]
  %v143 = vld [vmem:[%s1 + $0x154] sm:$0xf]
  %v144 = vld [vmem:[%s1 + $0x158] sm:$0xf]
  %v145 = vld [vmem:[%s1 + $0x15c] sm:$0xf]
  %v146 = vld [vmem:[%s1 + $0x160] sm:$0xf]
  %v147 = vld [vmem:[%s1 + $0x164] sm:$0xf]
  %v148 = vld [vmem:[%s1 + $0x168] sm:$0xf]
  %v149 = vld [vmem:[%s1 + $0x16c] sm:$0xf]
  %v150 = vld [vmem:[%s1 + $0x170] sm:$0xf]
  %v151 = vld [vmem:[%s1 + $0x174] sm:$0xf]
  %v152 = vld [vmem:[%s1 + $0x178] sm:$0xf]
  %v153 = vld [vmem:[%s1 + $0x17c] sm:$0xf]
  %v154 = vld [vmem:[%s1 + $0x180] sm:$0xf]
  %v155 = vld [vmem:[%s1 + $0x184] sm:$0xf]
  %v156 = vld [vmem:[%s1 + $0x188] sm:$0xf]
  %v157 = vld [vmem:[%s1 + $0x18c] sm:$0xf]
  %v158 = vld [vmem:[%s1 + $0x190] sm:$0xf]
  %v159 = vld [vmem:[%s1 + $0x194] sm:$0xf]
  %v160 = vld [vmem:[%s1 + $0x198] sm:$0xf]
  %v161 = vld [vmem:[%s1 + $0x19c] sm:$0xf]
  %v162 = vld [vmem:[%s1 + $0x1a0] sm:$0xf]
  %v163 = vld [vmem:[%s1 + $0x1a4] sm:$0xf]
  %v164 = vld [vmem:[%s1 + $0x1a8] sm:$0xf]
  %v165 = vld [vmem:[%s1 + $0x1ac] sm:$0xf]
  %v166 = vld [vmem:[%s1 + $0x1b0] sm:$0xf]
  %v167 = vld [vmem:[%s1 + $0x1b4] sm:$0xf]
  %v168 = vld [vmem:[%s1 + $0x1b8] sm:$0xf]
  %v169 = vld [vmem:[%s1 + $0x1bc] sm:$0xf]
  %v170 = vld [vmem:[%s1 + $0x1c0] sm:$0xf]
  %v171 = vld [vmem:[%s1 + $0x1c4] sm:$0xf]
  %v172 = vld [vmem:[%s1 + $0x1c8] sm:$0xf]
  %v173 = vld [vmem:[%s1 + $0x1cc] sm:$0xf]
  %v174 = vld [vmem:[%s1 + $0x1d0] sm:$0xf]
  %v175 = vld [vmem:[%s1 + $0x1d4] sm:$0xf]
  %v176 = vld [vmem:[%s1 + $0x1d8] sm:$0xf]
  %v177 = vld [vmem:[%s1 + $0x1dc] sm:$0xf]
  %v178 = vld [vmem:[%s1 + $0x1e0] sm:$0xf]
  %v179 = vld [vmem:[%s1 + $0x1e4] sm:$0xf]
  %v180 = vld [vmem:[%s1 + $0x1e8] sm:$0xf]
  %v181 = vld [vmem:[%s1 + $0x1ec] sm:$0xf]
  %v182 = vld [vmem:[%s1 + $0x1f0] sm:$0xf]
  %v183 = vld [vmem:[%s1 + $0x1f4] sm:$0xf]
  %v184 = vld [vmem:[%s1 + $0x1f8] sm:$0xf]
  %v185 = vld [vmem:[%s1 + $0x1fc] sm:$0xf]
  %v186 = vld [vmem:[#allocation2] sm:$0xff]
  %v187 = vld [vmem:[#allocation2 + $0x8] sm:$0xff]
  %v316 = vunpack.c.l.b16 %v58
  %v317 = vunpack.c.l.b16 %v59
  %v318 = vunpack.c.l.b16 %v60
  %v319 = vunpack.c.l.b16 %v61
  %v320 = vunpack.c.l.b16 %v62
  %v321 = vunpack.c.l.b16 %v63
  %v322 = vunpack.c.l.b16 %v64
  %v323 = vunpack.c.l.b16 %v65
  %v324 = vunpack.c.l.b16 %v66
  %v325 = vunpack.c.l.b16 %v67
  %v326 = vunpack.c.l.b16 %v68
  %v327 = vunpack.c.l.b16 %v69
  %v328 = vunpack.c.l.b16 %v70
  %v329 = vunpack.c.l.b16 %v71
  %v330 = vunpack.c.l.b16 %v72
  %v331 = vunpack.c.l.b16 %v73
  %v332 = vunpack.c.l.b16 %v74
  %v333 = vunpack.c.l.b16 %v75
  %v334 = vunpack.c.l.b16 %v76
  %v335 = vunpack.c.l.b16 %v77
  %v336 = vunpack.c.l.b16 %v78
  %v337 = vunpack.c.l.b16 %v79
  %v338 = vunpack.c.l.b16 %v80
  %v339 = vunpack.c.l.b16 %v81
  %v340 = vunpack.c.l.b16 %v82
  %v341 = vunpack.c.l.b16 %v83
  %v342 = vunpack.c.l.b16 %v84
  %v343 = vunpack.c.l.b16 %v85
  %v344 = vunpack.c.l.b16 %v86
  %v345 = vunpack.c.l.b16 %v87
  %v346 = vunpack.c.l.b16 %v88
  %v347 = vunpack.c.l.b16 %v89
  %v348 = vunpack.c.l.b16 %v90
  %v349 = vunpack.c.l.b16 %v91
  %v350 = vunpack.c.l.b16 %v92
  %v351 = vunpack.c.l.b16 %v93
  %v352 = vunpack.c.l.b16 %v94
  %v353 = vunpack.c.l.b16 %v95
  %v354 = vunpack.c.l.b16 %v96
  %v355 = vunpack.c.l.b16 %v97
  %v356 = vunpack.c.l.b16 %v98
  %v357 = vunpack.c.l.b16 %v99
  %v358 = vunpack.c.l.b16 %v100
  %v359 = vunpack.c.l.b16 %v101
  %v360 = vunpack.c.l.b16 %v102
  %v361 = vunpack.c.l.b16 %v103
  %v362 = vunpack.c.l.b16 %v104
  %v363 = vunpack.c.l.b16 %v105
  %v364 = vunpack.c.l.b16 %v106
  %v365 = vunpack.c.l.b16 %v107
  %v366 = vunpack.c.l.b16 %v108
  %v367 = vunpack.c.l.b16 %v109
  %v368 = vunpack.c.l.b16 %v110
  %v369 = vunpack.c.l.b16 %v111
  %v370 = vunpack.c.l.b16 %v112
  %v371 = vunpack.c.l.b16 %v113
  %v372 = vunpack.c.l.b16 %v114
  %v373 = vunpack.c.l.b16 %v115
  %v374 = vunpack.c.l.b16 %v116
  %v375 = vunpack.c.l.b16 %v117
  %v376 = vunpack.c.l.b16 %v118
  %v377 = vunpack.c.l.b16 %v119
  %v378 = vunpack.c.l.b16 %v120
  %v379 = vunpack.c.l.b16 %v121
  %v380 = vunpack.c.l.b16 %v122
  %v381 = vunpack.c.l.b16 %v123
  %v382 = vunpack.c.l.b16 %v124
  %v383 = vunpack.c.l.b16 %v125
  %v384 = vunpack.c.l.b16 %v126
  %v385 = vunpack.c.l.b16 %v127
  %v386 = vunpack.c.l.b16 %v128
  %v387 = vunpack.c.l.b16 %v129
  %v388 = vunpack.c.l.b16 %v130
  %v389 = vunpack.c.l.b16 %v131
  %v390 = vunpack.c.l.b16 %v132
  %v391 = vunpack.c.l.b16 %v133
  %v392 = vunpack.c.l.b16 %v134
  %v393 = vunpack.c.l.b16 %v135
  %v394 = vunpack.c.l.b16 %v136
  %v395 = vunpack.c.l.b16 %v137
  %v396 = vunpack.c.l.b16 %v138
  %v397 = vunpack.c.l.b16 %v139
  %v398 = vunpack.c.l.b16 %v140
  %v399 = vunpack.c.l.b16 %v141
  %v400 = vunpack.c.l.b16 %v142
  %v401 = vunpack.c.l.b16 %v143
  %v402 = vunpack.c.l.b16 %v144
  %v403 = vunpack.c.l.b16 %v145
  %v404 = vunpack.c.l.b16 %v146
  %v405 = vunpack.c.l.b16 %v147
  %v406 = vunpack.c.l.b16 %v148
  %v407 = vunpack.c.l.b16 %v149
  %v408 = vunpack.c.l.b16 %v150
  %v409 = vunpack.c.l.b16 %v151
  %v410 = vunpack.c.l.b16 %v152
  %v411 = vunpack.c.l.b16 %v153
  %v412 = vunpack.c.l.b16 %v154
  %v413 = vunpack.c.l.b16 %v155
  %v414 = vunpack.c.l.b16 %v156
  %v415 = vunpack.c.l.b16 %v157
  %v416 = vunpack.c.l.b16 %v158
  %v417 = vunpack.c.l.b16 %v159
  %v418 = vunpack.c.l.b16 %v160
  %v419 = vunpack.c.l.b16 %v161
  %v420 = vunpack.c.l.b16 %v162
  %v421 = vunpack.c.l.b16 %v163
  %v422 = vunpack.c.l.b16 %v164
  %v423 = vunpack.c.l.b16 %v165
  %v424 = vunpack.c.l.b16 %v166
  %v425 = vunpack.c.l.b16 %v167
  %v426 = vunpack.c.l.b16 %v168
  %v427 = vunpack.c.l.b16 %v169
  %v428 = vunpack.c.l.b16 %v170
  %v429 = vunpack.c.l.b16 %v171
  %v430 = vunpack.c.l.b16 %v172
  %v431 = vunpack.c.l.b16 %v173
  %v432 = vunpack.c.l.b16 %v174
  %v433 = vunpack.c.l.b16 %v175
  %v434 = vunpack.c.l.b16 %v176
  %v435 = vunpack.c.l.b16 %v177
  %v436 = vunpack.c.l.b16 %v178
  %v437 = vunpack.c.l.b16 %v179
  %v438 = vunpack.c.l.b16 %v180
  %v439 = vunpack.c.l.b16 %v181
  %v440 = vunpack.c.l.b16 %v182
  %v441 = vunpack.c.l.b16 %v183
  %v442 = vunpack.c.l.b16 %v184
  %v443 = vunpack.c.l.b16 %v185
  %v444 = vpack.c.b16 %v317, %v316
  %v445 = vpack.c.b16 %v319, %v318
  %v446 = vpack.c.b16 %v321, %v320
  %v447 = vpack.c.b16 %v323, %v322
  %v448 = vpack.c.b16 %v325, %v324
  %v449 = vpack.c.b16 %v327, %v326
  %v450 = vpack.c.b16 %v329, %v328
  %v451 = vpack.c.b16 %v331, %v330
  %v452 = vpack.c.b16 %v333, %v332
  %v453 = vpack.c.b16 %v335, %v334
  %v454 = vpack.c.b16 %v337, %v336
  %v455 = vpack.c.b16 %v339, %v338
  %v456 = vpack.c.b16 %v341, %v340
  %v457 = vpack.c.b16 %v343, %v342
  %v458 = vpack.c.b16 %v345, %v344
  %v459 = vpack.c.b16 %v347, %v346
  %v460 = vpack.c.b16 %v349, %v348
  %v461 = vpack.c.b16 %v351, %v350
  %v462 = vpack.c.b16 %v353, %v352
  %v463 = vpack.c.b16 %v355, %v354
  %v464 = vpack.c.b16 %v357, %v356
  %v465 = vpack.c.b16 %v359, %v358
  %v466 = vpack.c.b16 %v361, %v360
  %v467 = vpack.c.b16 %v363, %v362
  %v468 = vpack.c.b16 %v365, %v364
  %v469 = vpack.c.b16 %v367, %v366
  %v470 = vpack.c.b16 %v369, %v368
  %v471 = vpack.c.b16 %v371, %v370
  %v472 = vpack.c.b16 %v373, %v372
  %v473 = vpack.c.b16 %v375, %v374
  %v474 = vpack.c.b16 %v377, %v376
  %v475 = vpack.c.b16 %v379, %v378
  %v476 = vpack.c.b16 %v381, %v380
  %v477 = vpack.c.b16 %v383, %v382
  %v478 = vpack.c.b16 %v385, %v384
  %v479 = vpack.c.b16 %v387, %v386
  %v480 = vpack.c.b16 %v389, %v388
  %v481 = vpack.c.b16 %v391, %v390
  %v482 = vpack.c.b16 %v393, %v392
  %v483 = vpack.c.b16 %v395, %v394
  %v484 = vpack.c.b16 %v397, %v396
  %v485 = vpack.c.b16 %v399, %v398
  %v486 = vpack.c.b16 %v401, %v400
  %v487 = vpack.c.b16 %v403, %v402
  %v488 = vpack.c.b16 %v405, %v404
  %v489 = vpack.c.b16 %v407, %v406
  %v490 = vpack.c.b16 %v409, %v408
  %v491 = vpack.c.b16 %v411, %v410
  %v492 = vpack.c.b16 %v413, %v412
  %v493 = vpack.c.b16 %v415, %v414
  %v494 = vpack.c.b16 %v417, %v416
  %v495 = vpack.c.b16 %v419, %v418
  %v496 = vpack.c.b16 %v421, %v420
  %v497 = vpack.c.b16 %v423, %v422
  %v498 = vpack.c.b16 %v425, %v424
  %v499 = vpack.c.b16 %v427, %v426
  %v500 = vpack.c.b16 %v429, %v428
  %v501 = vpack.c.b16 %v431, %v430
  %v502 = vpack.c.b16 %v433, %v432
  %v503 = vpack.c.b16 %v435, %v434
  %v504 = vpack.c.b16 %v437, %v436
  %v505 = vpack.c.b16 %v439, %v438
  %v506 = vpack.c.b16 %v441, %v440
  %v507 = vpack.c.b16 %v443, %v442
  %572 = vmatprep.subr.bf16.mxu0 0
  %573 = vmatpush1.bf16.msra.mxu0 %v444
  %574 = vmatprep.subr.bf16.mxu0 0
  %575 = vmatpush1.bf16.msra.mxu0 %v445
  %576 = vmatprep.subr.bf16.mxu0 0
  %577 = vmatpush1.bf16.msra.mxu0 %v446
  %578 = vmatprep.subr.bf16.mxu0 0
  %579 = vmatpush1.bf16.msra.mxu0 %v447
  %580 = vmatprep.subr.bf16.mxu0 0
  %581 = vmatpush1.bf16.msra.mxu0 %v448
  %582 = vmatprep.subr.bf16.mxu0 0
  %583 = vmatpush1.bf16.msra.mxu0 %v449
  %584 = vmatprep.subr.bf16.mxu0 0
  %585 = vmatpush1.bf16.msra.mxu0 %v450
  %586 = vmatprep.subr.bf16.mxu0 0
  %587 = vmatpush1.bf16.msra.mxu0 %v451
  %588 = vmatprep.subr.bf16.mxu0 0
  %589 = vmatpush1.bf16.msra.mxu0 %v452
  %590 = vmatprep.subr.bf16.mxu0 0
  %591 = vmatpush1.bf16.msra.mxu0 %v453
  %592 = vmatprep.subr.bf16.mxu0 0
  %593 = vmatpush1.bf16.msra.mxu0 %v454
  %594 = vmatprep.subr.bf16.mxu0 0
  %595 = vmatpush1.bf16.msra.mxu0 %v455
  %596 = vmatprep.subr.bf16.mxu0 0
  %597 = vmatpush1.bf16.msra.mxu0 %v456
  %598 = vmatprep.subr.bf16.mxu0 0
  %599 = vmatpush1.bf16.msra.mxu0 %v457
  %600 = vmatprep.subr.bf16.mxu0 0
  %601 = vmatpush1.bf16.msra.mxu0 %v458
  %602 = vmatprep.subr.bf16.mxu0 0
  %603 = vmatpush1.bf16.msra.mxu0 %v459
  %604 = vmatprep.mubr.bf16.mxu0 %v51
  %605 = vmatmul.mubr.bf16.gmra.mrb[0].mxu0 %v50
  %v606 = vpop.f32.mrb[0].mxu0
  %v607 = vadd.f32 0.0, %v606
  %v608 = vpop.f32.mrb[0].mxu0
  %v609 = vpop.f32.mrb[0].mxu0
  %v610 = vadd.f32 0.0, %v609
  %v611 = vpop.f32.mrb[0].mxu0
  %612 = vdwg.mxu0
  %613 = vmatprep.subr.bf16.mxu0 0
  %614 = vmatpush1.bf16.msra.mxu0 %v460
  %615 = vmatprep.subr.bf16.mxu0 0
  %616 = vmatpush1.bf16.msra.mxu0 %v461
  %617 = vmatprep.subr.bf16.mxu0 0
  %618 = vmatpush1.bf16.msra.mxu0 %v462
  %619 = vmatprep.subr.bf16.mxu0 0
  %620 = vmatpush1.bf16.msra.mxu0 %v463
  %621 = vmatprep.subr.bf16.mxu0 0
  %622 = vmatpush1.bf16.msra.mxu0 %v464
  %623 = vmatprep.subr.bf16.mxu0 0
  %624 = vmatpush1.bf16.msra.mxu0 %v465
  %625 = vmatprep.subr.bf16.mxu0 0
  %626 = vmatpush1.bf16.msra.mxu0 %v466
  %627 = vmatprep.subr.bf16.mxu0 0
  %628 = vmatpush1.bf16.msra.mxu0 %v467
  %629 = vmatprep.subr.bf16.mxu0 0
  %630 = vmatpush1.bf16.msra.mxu0 %v468
  %631 = vmatprep.subr.bf16.mxu0 0
  %632 = vmatpush1.bf16.msra.mxu0 %v469
  %633 = vmatprep.subr.bf16.mxu0 0
  %634 = vmatpush1.bf16.msra.mxu0 %v470
  %635 = vmatprep.subr.bf16.mxu0 0
  %636 = vmatpush1.bf16.msra.mxu0 %v471
  %637 = vmatprep.subr.bf16.mxu0 0
  %638 = vmatpush1.bf16.msra.mxu0 %v472
  %639 = vmatprep.subr.bf16.mxu0 0
  %640 = vmatpush1.bf16.msra.mxu0 %v473
  %641 = vmatprep.subr.bf16.mxu0 0
  %642 = vmatpush1.bf16.msra.mxu0 %v474
  %643 = vmatprep.subr.bf16.mxu0 0
  %644 = vmatpush1.bf16.msra.mxu0 %v475
  %645 = vmatprep.mubr.bf16.mxu0 %v53
  %646 = vmatmul.mubr.bf16.gmra.mrb[0].mxu0 %v52
  %v647 = vpop.f32.mrb[0].mxu0
  %v648 = vadd.f32 %v607, %v647
  %v649 = vpop.f32.mrb[0].mxu0
  %v650 = vpop.f32.mrb[0].mxu0
  %v651 = vadd.f32 %v610, %v650
  %v652 = vpop.f32.mrb[0].mxu0
  %653 = vdwg.mxu0
  %654 = vmatprep.subr.bf16.mxu0 0
  %655 = vmatpush1.bf16.msra.mxu0 %v476
  %656 = vmatprep.subr.bf16.mxu0 0
  %657 = vmatpush1.bf16.msra.mxu0 %v477
  %658 = vmatprep.subr.bf16.mxu0 0
  %659 = vmatpush1.bf16.msra.mxu0 %v478
  %660 = vmatprep.subr.bf16.mxu0 0
  %661 = vmatpush1.bf16.msra.mxu0 %v479
  %662 = vmatprep.subr.bf16.mxu0 0
  %663 = vmatpush1.bf16.msra.mxu0 %v480
  %664 = vmatprep.subr.bf16.mxu0 0
  %665 = vmatpush1.bf16.msra.mxu0 %v481
  %666 = vmatprep.subr.bf16.mxu0 0
  %667 = vmatpush1.bf16.msra.mxu0 %v482
  %668 = vmatprep.subr.bf16.mxu0 0
  %669 = vmatpush1.bf16.msra.mxu0 %v483
  %670 = vmatprep.subr.bf16.mxu0 0
  %671 = vmatpush1.bf16.msra.mxu0 %v484
  %672 = vmatprep.subr.bf16.mxu0 0
  %673 = vmatpush1.bf16.msra.mxu0 %v485
  %674 = vmatprep.subr.bf16.mxu0 0
  %675 = vmatpush1.bf16.msra.mxu0 %v486
  %676 = vmatprep.subr.bf16.mxu0 0
  %677 = vmatpush1.bf16.msra.mxu0 %v487
  %678 = vmatprep.subr.bf16.mxu0 0
  %679 = vmatpush1.bf16.msra.mxu0 %v488
  %680 = vmatprep.subr.bf16.mxu0 0
  %681 = vmatpush1.bf16.msra.mxu0 %v489
  %682 = vmatprep.subr.bf16.mxu0 0
  %683 = vmatpush1.bf16.msra.mxu0 %v490
  %684 = vmatprep.subr.bf16.mxu0 0
  %685 = vmatpush1.bf16.msra.mxu0 %v491
  %686 = vmatprep.mubr.bf16.mxu0 %v55
  %687 = vmatmul.mubr.bf16.gmra.mrb[0].mxu0 %v54
  %v688 = vpop.f32.mrb[0].mxu0
  %v689 = vadd.f32 %v648, %v688
  %v690 = vpop.f32.mrb[0].mxu0
  %v691 = vpop.f32.mrb[0].mxu0
  %v692 = vadd.f32 %v651, %v691
  %v693 = vpop.f32.mrb[0].mxu0
  %694 = vdwg.mxu0
  %695 = vmatprep.subr.bf16.mxu0 0
  %696 = vmatpush1.bf16.msra.mxu0 %v492
  %697 = vmatprep.subr.bf16.mxu0 0
  %698 = vmatpush1.bf16.msra.mxu0 %v493
  %699 = vmatprep.subr.bf16.mxu0 0
  %700 = vmatpush1.bf16.msra.mxu0 %v494
  %701 = vmatprep.subr.bf16.mxu0 0
  %702 = vmatpush1.bf16.msra.mxu0 %v495
  %703 = vmatprep.subr.bf16.mxu0 0
  %704 = vmatpush1.bf16.msra.mxu0 %v496
  %705 = vmatprep.subr.bf16.mxu0 0
  %706 = vmatpush1.bf16.msra.mxu0 %v497
  %707 = vmatprep.subr.bf16.mxu0 0
  %708 = vmatpush1.bf16.msra.mxu0 %v498
  %709 = vmatprep.subr.bf16.mxu0 0
  %710 = vmatpush1.bf16.msra.mxu0 %v499
  %711 = vmatprep.subr.bf16.mxu0 0
  %712 = vmatpush1.bf16.msra.mxu0 %v500
  %713 = vmatprep.subr.bf16.mxu0 0
  %714 = vmatpush1.bf16.msra.mxu0 %v501
  %715 = vmatprep.subr.bf16.mxu0 0
  %716 = vmatpush1.bf16.msra.mxu0 %v502
  %717 = vmatprep.subr.bf16.mxu0 0
  %718 = vmatpush1.bf16.msra.mxu0 %v503
  %719 = vmatprep.subr.bf16.mxu0 0
  %720 = vmatpush1.bf16.msra.mxu0 %v504
  %721 = vmatprep.subr.bf16.mxu0 0
  %722 = vmatpush1.bf16.msra.mxu0 %v505
  %723 = vmatprep.subr.bf16.mxu0 0
  %724 = vmatpush1.bf16.msra.mxu0 %v506
  %725 = vmatprep.subr.bf16.mxu0 0
  %726 = vmatpush1.bf16.msra.mxu0 %v507
  %727 = vmatprep.mubr.bf16.mxu0 %v57
  %728 = vmatmul.mubr.bf16.gmra.mrb[0].mxu0 %v56
  %v729 = vpop.f32.mrb[0].mxu0
  %v730 = vadd.f32 %v689, %v729
  %v731 = vpop.f32.mrb[0].mxu0
  %v732 = vpop.f32.mrb[0].mxu0
  %v733 = vadd.f32 %v692, %v732
  %v734 = vpop.f32.mrb[0].mxu0
  %735 = vdwg.mxu0
  %v736 = vadd.f32 %v186, %v730
  %v737 = vadd.f32 %v187, %v733
  %738 = vst [vmem:[#allocation2] sm:$0xff] %v736
  %739 = vst [vmem:[#allocation2 + $0x8] sm:$0xff] %v737
  // Predicated region
  $region22: #{forward_and_loss.1} parent=0 // pred_check
    %p740 = pneg %p20
  $region23: #{forward_and_loss.1} parent=0 // pred_check_branch
    %742 = sbr.rel (%p740) target = $region25
  $region24: #{forward_and_loss.1} parent=0 // pred_region
    %v743 = vld [vmem:[#allocation2] sm:$0xff]
    %v744 = vld [vmem:[#allocation2 + $0x8] sm:$0xff]
    %v745 = vpack.c.bf16 %v744, %v743
    %v747 = vunpack.c.l.b16 %v745
    %v748 = vunpack.c.h.b16 %v745
    %v749 = vpack.c.b16 %v747, %v747
    %v750 = vpack.c.b16 %v748, %v748
    %753 = vst [vmem:[%s4] sm:$0xf] %v749
    %754 = vst [vmem:[%s4 + $0x4] sm:$0xf] %v750
    %s755 = smul.u32 0, 16
    %v756 = vlaneseq
    %v757 = vshrl.u32 %v756, 7
    %v758 = vadd.s32 %v757, 8
    %v759 = vstv %s755
    %v760 = vadd.s32 %v759, %v757
    %v761 = vadd.s32 %v759, %v758
    %v762 = vlaneseq
    %v763 = vand.u32 %v762, 127
    %vm764 = vcmp.lt.s32.totalorder %v760, 2
    %vm765 = vcmp.lt.s32.totalorder %v761, 2
    %vm766 = vcmp.lt.s32.totalorder %v763, 10
    %vm767 = vmand %vm764, %vm766
    %vm768 = vmand %vm765, %vm766
    %v769 = vld [vmem:[%s3] sm:$0xff]
    %v770 = vld [vmem:[%s3 + $0x8] sm:$0xff]
    %771 = vset.pattern.permute.xlu0 0
    %772 = vperm.xlu0 %771, %v769
    %v773 = vpop.permute.xlu0 %772
    %774 = vset.pattern.permute.xlu0 0
    %775 = vperm.xlu0 %774, %v770
    %v776 = vpop.permute.xlu0 %775
    %vm777 = vcmp.eq.s32.totalorder %v763, %v773
    %vm778 = vcmp.eq.s32.totalorder %v763, %v776
    %v779 = vsel %vm777, 1, 0
    %v780 = vsel %vm778, 1, 0
    %v781 = vcvt.s32.f32 %v779
    %v782 = vcvt.s32.f32 %v780
    %v783 = vsub.f32 %v743, %v781
    %v784 = vsub.f32 %v744, %v782
    %v785 = vsel %vm767, %v783, 0.0
    %v786 = vsel %vm768, %v784, 0.0
    %v787 = vmul.f32 %v785, %v785
    %v788 = vmul.f32 %v786, %v786
    %v789 = vadd.f32 %v787, %v788
    %790 = vadd.xlane.f32.xlu0 %v789
    %v791 = vpop.xlane.xlu0 %790
    %v792 = vrot.slane %v791, 4
    %v793 = vadd.f32 %v791, %v792
    %v794 = vrot.slane %v793, 2
    %v795 = vadd.f32 %v793, %v794
    %v796 = vrot.slane %v795, 1
    %v797 = vadd.f32 %v795, %v796
    %s798 = vtos %v797
    %v799 = vstv %s798
    %v800 = vadd.f32 %v799, 0.0
    %801 = vst [vmem:[%s5] sm:$0xff] %v800
  $region25: #{forward_and_loss.1} parent=0 // pred_fallthru
    _
  // Predicated region
  $region26: #{forward_and_loss.1} parent=0 // pred_check
    _
  $region27: #{forward_and_loss.1} parent=0 // pred_check_branch
    %803 = sbr.rel (0) target = $region29
  $region28: #{forward_and_loss.1} parent=0 // pred_region
    _
  $region29: #{forward_and_loss.1} parent=0 // pred_fallthru
    _
  // Predicated region
  $region30: #{forward_and_loss.1} parent=0 // pred_check
    _
  $region31: #{forward_and_loss.1} parent=0 // pred_check_branch
    %805 = sbr.rel (0) target = $region33
  $region32: #{forward_and_loss.1} parent=0 // pred_region
    _
  $region33: #{forward_and_loss.1} parent=0 // pred_fallthru
    _
  // Predicated region
  $region34: #{forward_and_loss.1} parent=0 // pred_check
    _
  $region35: #{forward_and_loss.1} parent=0 // pred_check_branch
    %807 = sbr.rel (0) target = $region37
  $region36: #{forward_and_loss.1} parent=0 // pred_region
    _
  $region37: #{forward_and_loss.1} parent=0 // pred_fallthru
    _
  // Predicated region
  $region38: #{forward_and_loss.1} parent=0 // pred_check
    _
  $region39: #{forward_and_loss.1} parent=0 // pred_check_branch
    %809 = sbr.rel (0) target = $region41
  $region40: #{forward_and_loss.1} parent=0 // pred_region
    _
  $region41: #{forward_and_loss.1} parent=0 // pred_fallthru
    _

</llo_original>
